<compile_context>
chip_gen: v7x
topology: tpu7x:2x2x1
jax: 0.10.0
libtpu: 0.0.40
codegen_flags: <defaults>
</compile_context>

<pallas_src>
import jax
import jax.numpy as jnp
from jax.experimental import pallas as pl
from jax.experimental.pallas import tpu as pltpu


def _fused_kernel(xu_ref, w_ref, o_ref):
    # xu_ref: (R, S+C)   w_ref: (S+C, S)   o_ref: (R, S)
    # Single fused MXU matmul; weights already fused/transposed outside.
    o_ref[...] = jnp.dot(
        xu_ref[...], w_ref[...], preferred_element_type=jnp.float32
    )


def _fuse_weights(lin_dyn_x, lin_dyn_u):
    # W^T = [A | B]^T : (S+C, S).  Parameter prep — do once outside the hot
    # path (cache if the layer is applied repeatedly with fixed weights).
    return jnp.concatenate([lin_dyn_x, lin_dyn_u], axis=1).T


def linear_layer_forward(lin_dyn_x, lin_dyn_u, ctrl, x):
    """Single-state forward (matches torch.mv(A, x) + torch.mv(B, ctrl)).

    lin_dyn_x: (S, S) f32, lin_dyn_u: (S, C) f32, ctrl: (C,) f32, x: (S,) f32
    returns:   (S,) f32
    """
    S = lin_dyn_x.shape[0]
    C = lin_dyn_u.shape[1]

    w_t = _fuse_weights(lin_dyn_x, lin_dyn_u)           # (S+C, S)
    xu = jnp.concatenate([x, ctrl]).reshape(1, S + C)   # (1, S+C)

    out_row = pl.pallas_call(
        _fused_kernel,
        out_shape=jax.ShapeDtypeStruct((1, S), jnp.float32),
        in_specs=[
            pl.BlockSpec(memory_space=pltpu.MemorySpace.VMEM),
            pl.BlockSpec(memory_space=pltpu.MemorySpace.VMEM),
        ],
        out_specs=pl.BlockSpec(memory_space=pltpu.MemorySpace.VMEM),
    )(xu, w_t)
    return out_row.reshape(S)


def linear_layer_forward_batched(lin_dyn_x, lin_dyn_u, ctrl, xs, *, bt=8):
    """Batched rollout-style forward: out[b] = A @ xs[b] + B @ ctrl.

    xs: (B, S) f32 with B a multiple of `bt` (bt a multiple of 8 so stores are
    sublane-aligned).  Weights stay VMEM-resident across grid steps.
    """
    B, S = xs.shape
    C = lin_dyn_u.shape[1]
    assert B % bt == 0, "batch must be a multiple of the batch tile"

    w_t = _fuse_weights(lin_dyn_x, lin_dyn_u)            # (S+C, S)
    u = jnp.broadcast_to(ctrl, (B, C))
    xu = jnp.concatenate([xs, u], axis=1)                # (B, S+C)

    return pl.pallas_call(
        _fused_kernel,
        out_shape=jax.ShapeDtypeStruct((B, S), jnp.float32),
        grid=(B // bt,),
        in_specs=[
            pl.BlockSpec((bt, S + C), lambda i: (i, 0)),
            # Same block index every step -> Pallas skips re-DMA; W^T resident.
            pl.BlockSpec((S + C, S), lambda i: (0, 0)),
        ],
        out_specs=pl.BlockSpec((bt, S), lambda i: (i, 0)),
        compiler_params=pltpu.CompilerParams(
            dimension_semantics=("parallel",)
        ),
    )(xu, w_t)


if __name__ == "__main__":
    # Small shapes consistent with the PyTorch module.
    dim_state = 32
    dim_ctrl = 8
    batch = 16

    key = jax.random.PRNGKey(0)
    k_a, k_b, k_c, k_x, k_xs = jax.random.split(key, 5)

    # Mirrors torch.rand(...)/10 and Parameter(torch.rand(dim_ctrl)).
    lin_dyn_x = jax.random.uniform(k_a, (dim_state, dim_state), jnp.float32) / 10.0
    lin_dyn_u = jax.random.uniform(k_b, (dim_state, dim_ctrl), jnp.float32) / 10.0
    ctrl = jax.random.uniform(k_c, (dim_ctrl,), jnp.float32)
    x = jax.random.uniform(k_x, (dim_state,), jnp.float32)
    xs = jax.random.uniform(k_xs, (batch, dim_state), jnp.float32)

    # Single-state forward (exact module semantics).
    out = jax.block_until_ready(linear_layer_forward(lin_dyn_x, lin_dyn_u, ctrl, x))
    ref = lin_dyn_x @ x + lin_dyn_u @ ctrl
    assert out.shape == (dim_state,)
    assert jnp.allclose(out, ref, atol=1e-5, rtol=1e-5)

    # Batched variant (amortizes launch/DMA, engages MXU rows).
    out_b = jax.block_until_ready(
        linear_layer_forward_batched(lin_dyn_x, lin_dyn_u, ctrl, xs)
    )
    ref_b = xs @ lin_dyn_x.T + (lin_dyn_u @ ctrl)[None, :]
    assert out_b.shape == (batch, dim_state)
    assert jnp.allclose(out_b, ref_b, atol=1e-5, rtol=1e-5)

    print("KERNEL_OK")
</pallas_src>

<mosaic_0001>
module attributes {stable_mosaic.version = 11 : i64} {
  func.func @_fused_kernel(%arg0: memref<1x40xf32, #tpu.memory_space<vmem>>, %arg1: memref<40x32xf32, #tpu.memory_space<vmem>>, %arg2: memref<1x32xf32, #tpu.memory_space<vmem>>) attributes {dimension_semantics = [], scalar_prefetch = 0 : i64, scratch_operands = 0 : i64, tpu.core_type = #tpu.core_type<tc>} {
    %c0 = arith.constant 0 : index
    %c0_0 = arith.constant 0 : index
    %0 = vector.load %arg0[%c0, %c0_0] : memref<1x40xf32, #tpu.memory_space<vmem>>, vector<1x40xf32>
    %c0_1 = arith.constant 0 : index
    %c0_2 = arith.constant 0 : index
    %1 = vector.load %arg1[%c0_1, %c0_2] : memref<40x32xf32, #tpu.memory_space<vmem>>, vector<40x32xf32>
    %cst = arith.constant dense<0.000000e+00> : vector<1x32xf32>
    %2 = tpu.matmul %0, %1, %cst {dimension_numbers = #tpu.dot_dimension_numbers<[1], [0], [0], [1], [0, 0, 1, 1], [], []>} : vector<1x40xf32>, vector<40x32xf32>, vector<1x32xf32> -> vector<1x32xf32>
    %c0_3 = arith.constant 0 : index
    %c0_4 = arith.constant 0 : index
    %3 = vector.load %arg2[%c0_3, %c0_4] : memref<1x32xf32, #tpu.memory_space<vmem>>, vector<1x32xf32>
    tpu.vector_store %arg2[%c0_3, %c0_4], %2 {strides = array<i32>} : memref<1x32xf32, #tpu.memory_space<vmem>>, vector<1x32xf32>,
    return
  }
}

</mosaic_0001>

<llo_original>
// kernel: tpu_custom_call.1
$region0: #{tpu_custom_call.1}
  #allocation0 [shape = 'u32[]', space=smem, size = 0x4, offset = 0x4, fixed_abs, tag = 'smem constant byte address 0x4 - core index']
  #allocation1 [shape = 'u32[144,128]{1,0:T(1,128)}', space=vmem, size = 0x12000, scoped, tag = 'internal scratch']
  %s0 = inlined_call_operand.vmem [shape: f32[1,40], index: 0, kind: input, shape index: {}]
  %s1 = inlined_call_operand.vmem [shape: f32[40,32], index: 1, kind: input, shape index: {}]
  %s2 = inlined_call_operand.hbm [shape: f32[1,32], index: 2, kind: output, shape index: {}]
  %s3 = sld [smem:[#allocation0]]
  $region18: #{tpu_custom_call.1} parent=0
    _
  %s5 = ssub.s32 1, %s3
  %s6 = scalar_select 0, %s5, %s3
  $region1: #{tpu_custom_call.1} parent=0
    #allocation2 [shape = 'u8[512]{0}', space=vmem, size = 0x400, scoped, tag = 'output window, operand 0, single buffered']
    #allocation3 [shape = 's32[1]{0}', space=sflag, size = 0x4, scoped, tag = 'scoped memory for tpu_custom_call.1']
    %7 = vsyncpa [#allocation3], 0
    // Predicated region
    $region2: #{tpu_custom_call.1} parent=1 // pred_check
      _
    $region3: #{tpu_custom_call.1} parent=1 // pred_check_branch
      %9 = sbr.rel (0) target = $region5
    $region4: #{tpu_custom_call.1} parent=1 // pred_region
      _
    $region5: #{tpu_custom_call.1} parent=1 // pred_fallthru
      _
    // Predicated region
    $region6: #{tpu_custom_call.1} parent=1 // pred_check
      _
    $region7: #{tpu_custom_call.1} parent=1 // pred_check_branch
      %11 = sbr.rel (0) target = $region9
    $region8: #{tpu_custom_call.1} parent=1 // pred_region
      _
    $region9: #{tpu_custom_call.1} parent=1 // pred_fallthru
      _
    %v12 = vld [vmem:[%s0] sm:$0x1]
    %v13 = vld [vmem:[%s1] sm:$0xff]
    %v14 = vld [vmem:[%s1 + $0x8] sm:$0xff]
    %v15 = vld [vmem:[%s1 + $0x10] sm:$0xff]
    %v16 = vld [vmem:[%s1 + $0x18] sm:$0xff]
    %v17 = vld [vmem:[%s1 + $0x20] sm:$0xff]
    %vm18 = vcmask 326656
    %v20 = vsel %vm18, %v12, 0
    %22 = vmatprep.subr.mxu0 0.0
    %23 = vmatpush1.msra.mxu0 %v13
    %24 = vmatprep.subr.mxu0 0.0
    %25 = vmatpush1.msra.mxu0 %v14
    %26 = vmatprep.subr.mxu0 0.0
    %27 = vmatpush1.msra.mxu0 %v15
    %28 = vmatprep.subr.mxu0 0.0
    %29 = vmatpush1.msra.mxu0 %v16
    %30 = vmatprep.subr.mxu0 0.0
    %31 = vmatpush1.msra.mxu0 %v17
    %32 = vmatprep.subr.mxu0 0.0
    %33 = vmatpush1.msra.mxu0 0.0
    %34 = vmatprep.subr.mxu0 0.0
    %35 = vmatpush1.msra.mxu0 0.0
    %36 = vmatprep.subr.mxu0 0.0
    %37 = vmatpush1.msra.mxu0 0.0
    %38 = vmatprep.subr.mxu0 0.0
    %39 = vmatpush1.msra.mxu0 0.0
    %40 = vmatprep.subr.mxu0 0.0
    %41 = vmatpush1.msra.mxu0 0.0
    %42 = vmatprep.subr.mxu0 0.0
    %43 = vmatpush1.msra.mxu0 0.0
    %44 = vmatprep.subr.mxu0 0.0
    %45 = vmatpush1.msra.mxu0 0.0
    %46 = vmatprep.subr.mxu0 0.0
    %47 = vmatpush1.msra.mxu0 0.0
    %48 = vmatprep.subr.mxu0 0.0
    %49 = vmatpush1.msra.mxu0 0.0
    %50 = vmatprep.subr.mxu0 0.0
    %51 = vmatpush1.msra.mxu0 0.0
    %52 = vmatprep.subr.mxu0 0.0
    %53 = vmatpush1.msra.mxu0 0.0
    %54 = vmatprep.subr.mxu0 0.0
    %55 = vmatpush1.msra.mxu0 0.0
    %56 = vmatprep.subr.mxu0 0.0
    %57 = vmatpush1.msra.mxu0 0.0
    %58 = vmatprep.subr.mxu0 0.0
    %59 = vmatpush1.msra.mxu0 0.0
    %60 = vmatprep.subr.mxu0 0.0
    %61 = vmatpush1.msra.mxu0 0.0
    %62 = vmatprep.subr.mxu0 0.0
    %63 = vmatpush1.msra.mxu0 0.0
    %64 = vmatprep.subr.mxu0 0.0
    %65 = vmatpush1.msra.mxu0 0.0
    %66 = vmatprep.subr.mxu0 0.0
    %67 = vmatpush1.msra.mxu0 0.0
    %68 = vmatprep.subr.mxu0 0.0
    %69 = vmatpush1.msra.mxu0 0.0
    %70 = vmatprep.subr.mxu0 0.0
    %71 = vmatpush1.msra.mxu0 0.0
    %72 = vmatprep.subr.mxu0 0.0
    %73 = vmatpush1.msra.mxu0 0.0
    %74 = vmatprep.subr.mxu0 0.0
    %75 = vmatpush1.msra.mxu0 0.0
    %76 = vmatprep.subr.mxu0 0.0
    %77 = vmatpush1.msra.mxu0 0.0
    %78 = vmatprep.subr.mxu0 0.0
    %79 = vmatpush1.msra.mxu0 0.0
    %80 = vmatprep.subr.mxu0 0.0
    %81 = vmatpush1.msra.mxu0 0.0
    %82 = vmatprep.subr.mxu0 0.0
    %83 = vmatpush1.msra.mxu0 0.0
    %84 = vmatprep.subr.mxu0 0.0
    %85 = vmatpush1.msra.mxu0 0.0
    %86 = vmatprep.mubr.f32.mxu0 0.0
    %87 = vmatmul.mubr.f32.gmra.mrb[0].mxu0 %v20
    %v88 = vpop.f32.mrb[0].mxu0
    %v89 = vadd.f32 0.0, %v88
    %v90 = vpop.f32.mrb[0].mxu0
    %91 = vdwg.mxu0
    %vm92 = vcmask 253952
    %93 = vst.msk [vmem:[#allocation2] sm:$0x1] %vm92, %v89
    // Predicated region
    $region10: #{tpu_custom_call.1} parent=1 // pred_check
      _
    $region11: #{tpu_custom_call.1} parent=1 // pred_check_branch
      %95 = sbr.rel (0) target = $region13
    $region12: #{tpu_custom_call.1} parent=1 // pred_region
      %s97 = ssub.s32 16, 16
      %98 = vsyncadd [#allocation3], %s97
      %s100 = sshll.u32 [#allocation2], 4
      %s101 = int_to_ptr.vmem [resolvable:$true] %s100
      %103 = dma.vmem_to_hbm [thread:$0]  %s101, 16, %s2, [#allocation3]
    $region13: #{tpu_custom_call.1} parent=1 // pred_fallthru
      _
    // Predicated region
    $region14: #{tpu_custom_call.1} parent=1 // pred_check
      _
    $region15: #{tpu_custom_call.1} parent=1 // pred_check_branch
      %105 = sbr.rel (0) target = $region17
    $region16: #{tpu_custom_call.1} parent=1 // pred_region
      %106 = dma.done [#allocation3], 16
    $region17: #{tpu_custom_call.1} parent=1 // pred_fallthru
      _
    %107 = vsyncpa [#allocation3], 1

</llo_original>
